<compile_context>
chip_gen: v7x
topology: tpu7x:2x2x1
jax: 0.10.0
libtpu: 0.0.40
codegen_flags: <defaults>
</compile_context>

<pallas_src>
import jax
import jax.numpy as jnp
from jax.experimental import pallas as pl
from jax.experimental.pallas import tpu as pltpu


def _round_up(x, m):
    return ((x + m - 1) // m) * m


def _mlp_kernel(x_ref, w1_ref, b1_ref, w2_ref, b2_ref, w3_ref, b3_ref, o_ref):
    """Fused 3-layer MLP on one row tile; all (padded) weights resident in VMEM."""
    # Hoist the bias loads / broadcasts once per grid step.
    b1 = b1_ref[...]
    b2 = b2_ref[...]
    b3 = b3_ref[...]

    x = x_ref[...]  # fed to the MXU in its native dtype (no f32 upcast)

    # Layer 1: Linear(in -> hidden) + ReLU, f32 accumulation on the MXU.
    h = jnp.dot(x, w1_ref[...], preferred_element_type=jnp.float32) + b1
    h = jnp.maximum(h, 0.0).astype(x.dtype)

    # Layer 2: Linear(hidden -> hidden) + ReLU.
    h = jnp.dot(h, w2_ref[...], preferred_element_type=jnp.float32) + b2
    h = jnp.maximum(h, 0.0).astype(x.dtype)

    # Layer 3: Linear(hidden -> out), no activation (matches the module).
    y = jnp.dot(h, w3_ref[...], preferred_element_type=jnp.float32) + b3
    o_ref[...] = y.astype(o_ref.dtype)


def mlp_forward(x, params, *, row_tile=256, vmem_limit_bytes=64 * 1024 * 1024):
    """x: [N, in_feats]. params: dict of (w1,b1,w2,b2,w3,b3) with W as [fan_in, fan_out]."""
    w1, b1, w2, b2, w3, b3 = (params[k] for k in ("w1", "b1", "w2", "b2", "w3", "b3"))
    N, in_feats = x.shape
    hidden = w1.shape[1]
    out_feats = w3.shape[1]

    # ---- lane-dense padding of the feature dims (multiples of 128) ----------
    hidden_p = _round_up(hidden, 128)
    out_p = _round_up(out_feats, 128)

    def pad2(a, rows, cols):
        return jnp.pad(a, ((0, rows - a.shape[0]), (0, cols - a.shape[1])))

    w1p = pad2(w1, in_feats, hidden_p)
    b1p = pad2(b1, 1, hidden_p)
    w2p = pad2(w2, hidden_p, hidden_p)
    b2p = pad2(b2, 1, hidden_p)
    w3p = pad2(w3, hidden_p, out_p)
    b3p = pad2(b3, 1, out_p)

    # ---- ragged N: pad rows to a multiple of the row tile, slice afterwards --
    row_tile = max(8, min(int(row_tile), _round_up(N, 8)))
    row_tile = _round_up(row_tile, 8)
    n_pad = _round_up(N, row_tile)
    xp = jnp.pad(x, ((0, n_pad - N), (0, 0)))
    grid = (n_pad // row_tile,)

    in_specs = [
        pl.BlockSpec((row_tile, in_feats), lambda i: (i, 0)),   # x tile
        pl.BlockSpec((in_feats, hidden_p), lambda i: (0, 0)),   # w1 (grid-invariant)
        pl.BlockSpec((1, hidden_p), lambda i: (0, 0)),          # b1
        pl.BlockSpec((hidden_p, hidden_p), lambda i: (0, 0)),   # w2
        pl.BlockSpec((1, hidden_p), lambda i: (0, 0)),          # b2
        pl.BlockSpec((hidden_p, out_p), lambda i: (0, 0)),      # w3
        pl.BlockSpec((1, out_p), lambda i: (0, 0)),             # b3
    ]
    out_specs = pl.BlockSpec((row_tile, out_p), lambda i: (i, 0))

    itemsize = jnp.dtype(x.dtype).itemsize
    flops = 2 * n_pad * (in_feats * hidden_p + hidden_p * hidden_p + hidden_p * out_p)
    bytes_accessed = (
        xp.size * itemsize
        + sum(int(a.size) * jnp.dtype(a.dtype).itemsize
              for a in (w1p, b1p, w2p, b2p, w3p, b3p))
        + n_pad * out_p * itemsize
    )

    y_pad = pl.pallas_call(
        _mlp_kernel,
        out_shape=jax.ShapeDtypeStruct((n_pad, out_p), x.dtype),
        grid_spec=pltpu.PrefetchScalarGridSpec(
            num_scalar_prefetch=0,
            grid=grid,
            in_specs=in_specs,
            out_specs=out_specs,
        ),
        compiler_params=pltpu.CompilerParams(
            dimension_semantics=("parallel",),
            vmem_limit_bytes=vmem_limit_bytes,
        ),
        cost_estimate=pl.CostEstimate(
            flops=flops, transcendentals=0, bytes_accessed=bytes_accessed),
    )(xp, w1p, b1p, w2p, b2p, w3p, b3p)

    # Strip row and lane padding -> exact module semantics.
    return y_pad[:N, :out_feats]


def init_mlp_params(key, in_feats, out_feats, hidden_dim):
    """Deterministic init mimicking torch.nn.Linear default U(-1/sqrt(fan_in), +)."""
    ks = jax.random.split(key, 6)

    def linear(kw, kb, fan_in, fan_out):
        bound = 1.0 / jnp.sqrt(jnp.float32(fan_in))
        w = jax.random.uniform(kw, (fan_in, fan_out), jnp.float32, -bound, bound)
        b = jax.random.uniform(kb, (1, fan_out), jnp.float32, -bound, bound)
        return w, b

    w1, b1 = linear(ks[0], ks[1], in_feats, hidden_dim)
    w2, b2 = linear(ks[2], ks[3], hidden_dim, hidden_dim)
    w3, b3 = linear(ks[4], ks[5], hidden_dim, out_feats)
    return {"w1": w1, "b1": b1, "w2": w2, "b2": b2, "w3": w3, "b3": b3}


def mlp_reference(x, p):
    """Pure-JAX reference for correctness check."""
    h = jnp.maximum(x @ p["w1"] + p["b1"], 0.0)
    h = jnp.maximum(h @ p["w2"] + p["b2"], 0.0)
    return h @ p["w3"] + p["b3"]


if __name__ == "__main__":
    key = jax.random.PRNGKey(0)
    k_param, k_x = jax.random.split(key)

    # Small shapes consistent with the module's forward (feat: [N, in_feats]).
    # N deliberately not a multiple of 8 to exercise the ragged-row path.
    N, in_feats, hidden_dim, out_feats = 50, 8, 32, 4

    params = init_mlp_params(k_param, in_feats, out_feats, hidden_dim)
    x = jax.random.normal(k_x, (N, in_feats), jnp.float32)
    y_ref = mlp_reference(x, params)

    # Default (large) row tile -> single grid step for this tiny N.
    y = jax.block_until_ready(mlp_forward(x, params))
    assert y.shape == (N, out_feats)
    assert jnp.allclose(y, y_ref, atol=1e-5, rtol=1e-5), "mismatch vs reference (default tile)"

    # Small explicit row tile -> multi-step grid + row padding path.
    y2 = jax.block_until_ready(mlp_forward(x, params, row_tile=16))
    assert y2.shape == (N, out_feats)
    assert jnp.allclose(y2, y_ref, atol=1e-5, rtol=1e-5), "mismatch vs reference (tiled)"

    print("KERNEL_OK")
</pallas_src>

<mosaic_0001>
module attributes {stable_mosaic.version = 11 : i64} {
  func.func @_mlp_kernel(%arg0: i32, %arg1: memref<56x8xf32, #tpu.memory_space<vmem>>, %arg2: memref<8x128xf32, #tpu.memory_space<vmem>>, %arg3: memref<1x128xf32, #tpu.memory_space<vmem>>, %arg4: memref<128x128xf32, #tpu.memory_space<vmem>>, %arg5: memref<1x128xf32, #tpu.memory_space<vmem>>, %arg6: memref<128x128xf32, #tpu.memory_space<vmem>>, %arg7: memref<1x128xf32, #tpu.memory_space<vmem>>, %arg8: memref<56x128xf32, #tpu.memory_space<vmem>>) attributes {dimension_semantics = [#tpu.dimension_semantics<parallel>], iteration_bounds = array<i64: 1>, scalar_prefetch = 0 : i64, scratch_operands = 0 : i64, tpu.core_type = #tpu.core_type<tc>, window_params = [{transform_indices = @transform_0, window_bounds = array<i64: 56, 8>}, {pipeline_mode = #tpu.pipeline_mode<synchronous>, transform_indices = @transform_1, window_bounds = array<i64: 8, 128>}, {pipeline_mode = #tpu.pipeline_mode<synchronous>, transform_indices = @transform_2, window_bounds = array<i64: 1, 128>}, {pipeline_mode = #tpu.pipeline_mode<synchronous>, transform_indices = @transform_3, window_bounds = array<i64: 128, 128>}, {pipeline_mode = #tpu.pipeline_mode<synchronous>, transform_indices = @transform_4, window_bounds = array<i64: 1, 128>}, {pipeline_mode = #tpu.pipeline_mode<synchronous>, transform_indices = @transform_5, window_bounds = array<i64: 128, 128>}, {pipeline_mode = #tpu.pipeline_mode<synchronous>, transform_indices = @transform_6, window_bounds = array<i64: 1, 128>}, {transform_indices = @transform_7, window_bounds = array<i64: 56, 128>}]} {
    %c0 = arith.constant 0 : index
    %c0_0 = arith.constant 0 : index
    %0 = vector.load %arg3[%c0, %c0_0] : memref<1x128xf32, #tpu.memory_space<vmem>>, vector<1x128xf32>
    %c0_1 = arith.constant 0 : index
    %c0_2 = arith.constant 0 : index
    %1 = vector.load %arg5[%c0_1, %c0_2] : memref<1x128xf32, #tpu.memory_space<vmem>>, vector<1x128xf32>
    %c0_3 = arith.constant 0 : index
    %c0_4 = arith.constant 0 : index
    %2 = vector.load %arg7[%c0_3, %c0_4] : memref<1x128xf32, #tpu.memory_space<vmem>>, vector<1x128xf32>
    %c0_5 = arith.constant 0 : index
    %c0_6 = arith.constant 0 : index
    %3 = vector.load %arg1[%c0_5, %c0_6] : memref<56x8xf32, #tpu.memory_space<vmem>>, vector<56x8xf32>
    %c0_7 = arith.constant 0 : index
    %c0_8 = arith.constant 0 : index
    %4 = vector.load %arg2[%c0_7, %c0_8] : memref<8x128xf32, #tpu.memory_space<vmem>>, vector<8x128xf32>
    %cst = arith.constant dense<0.000000e+00> : vector<56x128xf32>
    %5 = tpu.matmul %3, %4, %cst {dimension_numbers = #tpu.dot_dimension_numbers<[1], [0], [0], [1], [0, 0, 1, 1], [], []>} : vector<56x8xf32>, vector<8x128xf32>, vector<56x128xf32> -> vector<56x128xf32>
    %6 = vector.broadcast %0 : vector<1x128xf32> to vector<56x128xf32>
    %7 = arith.addf %5, %6 : vector<56x128xf32>
    %cst_9 = arith.constant 0.000000e+00 : f32
    %8 = vector.broadcast %cst_9 : f32 to vector<56x128xf32>
    %9 = arith.maximumf %7, %8 : vector<56x128xf32>
    %c0_10 = arith.constant 0 : index
    %c0_11 = arith.constant 0 : index
    %10 = vector.load %arg4[%c0_10, %c0_11] : memref<128x128xf32, #tpu.memory_space<vmem>>, vector<128x128xf32>
    %cst_12 = arith.constant dense<0.000000e+00> : vector<56x128xf32>
    %11 = tpu.matmul %9, %10, %cst_12 {dimension_numbers = #tpu.dot_dimension_numbers<[1], [0], [0], [1], [0, 0, 1, 1], [], []>} : vector<56x128xf32>, vector<128x128xf32>, vector<56x128xf32> -> vector<56x128xf32>
    %12 = vector.broadcast %1 : vector<1x128xf32> to vector<56x128xf32>
    %13 = arith.addf %11, %12 : vector<56x128xf32>
    %cst_13 = arith.constant 0.000000e+00 : f32
    %14 = vector.broadcast %cst_13 : f32 to vector<56x128xf32>
    %15 = arith.maximumf %13, %14 : vector<56x128xf32>
    %c0_14 = arith.constant 0 : index
    %c0_15 = arith.constant 0 : index
    %16 = vector.load %arg6[%c0_14, %c0_15] : memref<128x128xf32, #tpu.memory_space<vmem>>, vector<128x128xf32>
    %cst_16 = arith.constant dense<0.000000e+00> : vector<56x128xf32>
    %17 = tpu.matmul %15, %16, %cst_16 {dimension_numbers = #tpu.dot_dimension_numbers<[1], [0], [0], [1], [0, 0, 1, 1], [], []>} : vector<56x128xf32>, vector<128x128xf32>, vector<56x128xf32> -> vector<56x128xf32>
    %18 = vector.broadcast %2 : vector<1x128xf32> to vector<56x128xf32>
    %19 = arith.addf %17, %18 : vector<56x128xf32>
    %c0_17 = arith.constant 0 : index
    %c0_18 = arith.constant 0 : index
    %20 = vector.load %arg8[%c0_17, %c0_18] : memref<56x128xf32, #tpu.memory_space<vmem>>, vector<56x128xf32>
    tpu.vector_store %arg8[%c0_17, %c0_18], %19 {strides = array<i32>} : memref<56x128xf32, #tpu.memory_space<vmem>>, vector<56x128xf32>,
    return
  }
  func.func @transform_0(%arg0: i32) -> (i32, i32) {
    %c0_i32 = arith.constant 0 : i32
    %c0_i32_0 = arith.constant 0 : i32
    return %arg0, %c0_i32 : i32, i32
  }
  func.func @transform_1(%arg0: i32) -> (i32, i32) {
    %c0_i32 = arith.constant 0 : i32
    %c0_i32_0 = arith.constant 0 : i32
    %c0_i32_1 = arith.constant 0 : i32
    return %c0_i32, %c0_i32_0 : i32, i32
  }
  func.func @transform_2(%arg0: i32) -> (i32, i32) {
    %c0_i32 = arith.constant 0 : i32
    %c0_i32_0 = arith.constant 0 : i32
    %c0_i32_1 = arith.constant 0 : i32
    return %c0_i32, %c0_i32_0 : i32, i32
  }
  func.func @transform_3(%arg0: i32) -> (i32, i32) {
    %c0_i32 = arith.constant 0 : i32
    %c0_i32_0 = arith.constant 0 : i32
    %c0_i32_1 = arith.constant 0 : i32
    return %c0_i32, %c0_i32_0 : i32, i32
  }
  func.func @transform_4(%arg0: i32) -> (i32, i32) {
    %c0_i32 = arith.constant 0 : i32
    %c0_i32_0 = arith.constant 0 : i32
    %c0_i32_1 = arith.constant 0 : i32
    return %c0_i32, %c0_i32_0 : i32, i32
  }
  func.func @transform_5(%arg0: i32) -> (i32, i32) {
    %c0_i32 = arith.constant 0 : i32
    %c0_i32_0 = arith.constant 0 : i32
    %c0_i32_1 = arith.constant 0 : i32
    return %c0_i32, %c0_i32_0 : i32, i32
  }
  func.func @transform_6(%arg0: i32) -> (i32, i32) {
    %c0_i32 = arith.constant 0 : i32
    %c0_i32_0 = arith.constant 0 : i32
    %c0_i32_1 = arith.constant 0 : i32
    return %c0_i32, %c0_i32_0 : i32, i32
  }
  func.func @transform_7(%arg0: i32) -> (i32, i32) {
    %c0_i32 = arith.constant 0 : i32
    %c0_i32_0 = arith.constant 0 : i32
    return %arg0, %c0_i32 : i32, i32
  }
}

</mosaic_0001>

<llo_original>
// kernel: tpu_custom_call.1
$region0: #{tpu_custom_call.1}
  #allocation0 [shape = 'u32[]', space=smem, size = 0x4, offset = 0x4, fixed_abs, tag = 'smem constant byte address 0x4 - core index']
  #allocation1 [shape = 'u32[144,128]{1,0:T(1,128)}', space=vmem, size = 0x12000, scoped, tag = 'internal scratch']
  %s0 = inlined_call_operand.hbm [shape: f32[56,8], index: 0, kind: input, shape index: {}]
  %s1 = inlined_call_operand.hbm [shape: f32[8,128], index: 1, kind: input, shape index: {}]
  %s2 = inlined_call_operand.hbm [shape: f32[1,128], index: 2, kind: input, shape index: {}]
  %s3 = inlined_call_operand.hbm [shape: f32[128,128], index: 3, kind: input, shape index: {}]
  %s4 = inlined_call_operand.hbm [shape: f32[1,128], index: 4, kind: input, shape index: {}]
  %s5 = inlined_call_operand.hbm [shape: f32[128,128], index: 5, kind: input, shape index: {}]
  %s6 = inlined_call_operand.hbm [shape: f32[1,128], index: 6, kind: input, shape index: {}]
  %s7 = inlined_call_operand.hbm [shape: f32[56,128], index: 7, kind: output, shape index: {}]
  %s8 = sld [smem:[#allocation0]]
  $region66: #{tpu_custom_call.1} parent=0
    _
  %s10 = ssub.s32 1, %s8
  %s11 = scalar_select 0, %s10, %s8
  $region1: #{tpu_custom_call.1} parent=0
    #allocation2 [shape = 'u8[28672]{0}', space=vmem, size = 0x7000, scoped, tag = 'input window, operand 0, single buffered']
    #allocation3 [shape = 's32[1]{0}', space=sflag, size = 0x4, scoped, tag = 'scoped memory for tpu_custom_call.1']
    #allocation4 [shape = 's32[1]{0}', space=sflag, size = 0x4, scoped, tag = 'scoped memory for tpu_custom_call.1']
    #allocation5 [shape = 'u8[4096]{0}', space=vmem, size = 0x1000, scoped, tag = 'input window, operand 1, single buffered']
    #allocation6 [shape = 's32[1]{0}', space=sflag, size = 0x4, scoped, tag = 'scoped memory for tpu_custom_call.1']
    #allocation7 [shape = 'u8[512]{0}', space=vmem, size = 0x400, scoped, tag = 'input window, operand 2, single buffered']
    #allocation8 [shape = 'u8[65536]{0}', space=vmem, size = 0x10000, scoped, tag = 'input window, operand 3, single buffered']
    #allocation9 [shape = 's32[1]{0}', space=sflag, size = 0x4, scoped, tag = 'scoped memory for tpu_custom_call.1']
    #allocation10 [shape = 'u8[512]{0}', space=vmem, size = 0x400, scoped, tag = 'input window, operand 4, single buffered']
    #allocation11 [shape = 'u8[65536]{0}', space=vmem, size = 0x10000, scoped, tag = 'input window, operand 5, single buffered']
    #allocation12 [shape = 's32[1]{0}', space=sflag, size = 0x4, scoped, tag = 'scoped memory for tpu_custom_call.1']
    #allocation13 [shape = 'u8[512]{0}', space=vmem, size = 0x400, scoped, tag = 'input window, operand 6, single buffered']
    #allocation14 [shape = 'u8[28672]{0}', space=vmem, size = 0x7000, scoped, tag = 'output window, operand 0, single buffered']
    %12 = vsyncpa [#allocation3], 0
    %13 = vsyncpa [#allocation6], 0
    %14 = vsyncpa [#allocation9], 0
    %15 = vsyncpa [#allocation12], 0
    %16 = vsyncpa [#allocation4], 0
    // Predicated region
    $region2: #{tpu_custom_call.1} parent=1 // pred_check
      _
    $region3: #{tpu_custom_call.1} parent=1 // pred_check_branch
      %18 = sbr.rel (0) target = $region5
    $region4: #{tpu_custom_call.1} parent=1 // pred_region
      %s20 = ssub.s32 896, 896
      %21 = vsyncadd [#allocation3], %s20
      %s22 = sshll.u32 [#allocation2], 4
      %s23 = int_to_ptr.vmem [resolvable:$true] %s22
      %28 = dma.hbm_to_vmem [thread:$0]  %s0, 896, %s23, [#allocation3], 128, 128, 8
    $region5: #{tpu_custom_call.1} parent=1 // pred_fallthru
      _
    // Predicated region
    $region6: #{tpu_custom_call.1} parent=1 // pred_check
      _
    $region7: #{tpu_custom_call.1} parent=1 // pred_check_branch
      %30 = sbr.rel (0) target = $region9
    $region8: #{tpu_custom_call.1} parent=1 // pred_region
      %s32 = ssub.s32 128, 128
      %33 = vsyncadd [#allocation6], %s32
      %s35 = sshll.u32 [#allocation5], 4
      %s36 = int_to_ptr.vmem [resolvable:$true] %s35
      %38 = dma.hbm_to_vmem [thread:$0]  %s1, 128, %s36, [#allocation6]
    $region9: #{tpu_custom_call.1} parent=1 // pred_fallthru
      _
    // Predicated region
    $region10: #{tpu_custom_call.1} parent=1 // pred_check
      _
    $region11: #{tpu_custom_call.1} parent=1 // pred_check_branch
      %40 = sbr.rel (0) target = $region13
    $region12: #{tpu_custom_call.1} parent=1 // pred_region
      %s42 = ssub.s32 16, 16
      %43 = vsyncadd [#allocation6], %s42
      %s45 = sshll.u32 [#allocation7], 4
      %s46 = int_to_ptr.vmem [resolvable:$true] %s45
      %48 = dma.hbm_to_vmem [thread:$0]  %s2, 16, %s46, [#allocation6]
    $region13: #{tpu_custom_call.1} parent=1 // pred_fallthru
      _
    // Predicated region
    $region14: #{tpu_custom_call.1} parent=1 // pred_check
      _
    $region15: #{tpu_custom_call.1} parent=1 // pred_check_branch
      %50 = sbr.rel (0) target = $region17
    $region16: #{tpu_custom_call.1} parent=1 // pred_region
      %s52 = ssub.s32 2048, 2048
      %53 = vsyncadd [#allocation9], %s52
      %s54 = sshll.u32 [#allocation8], 4
      %s55 = int_to_ptr.vmem [resolvable:$true] %s54
      %60 = dma.hbm_to_vmem [thread:$0]  %s3, 2048, %s55, [#allocation9], 128, 128, 8
    $region17: #{tpu_custom_call.1} parent=1 // pred_fallthru
      _
    // Predicated region
    $region18: #{tpu_custom_call.1} parent=1 // pred_check
      _
    $region19: #{tpu_custom_call.1} parent=1 // pred_check_branch
      %62 = sbr.rel (0) target = $region21
    $region20: #{tpu_custom_call.1} parent=1 // pred_region
      %s64 = ssub.s32 16, 16
      %65 = vsyncadd [#allocation9], %s64
      %s67 = sshll.u32 [#allocation10], 4
      %s68 = int_to_ptr.vmem [resolvable:$true] %s67
      %70 = dma.hbm_to_vmem [thread:$0]  %s4, 16, %s68, [#allocation9]
    $region21: #{tpu_custom_call.1} parent=1 // pred_fallthru
      _
    // Predicated region
    $region22: #{tpu_custom_call.1} parent=1 // pred_check
      _
    $region23: #{tpu_custom_call.1} parent=1 // pred_check_branch
      %72 = sbr.rel (0) target = $region25
    $region24: #{tpu_custom_call.1} parent=1 // pred_region
      %s74 = ssub.s32 2048, 2048
      %75 = vsyncadd [#allocation12], %s74
      %s76 = sshll.u32 [#allocation11], 4
      %s77 = int_to_ptr.vmem [resolvable:$true] %s76
      %82 = dma.hbm_to_vmem [thread:$0]  %s5, 2048, %s77, [#allocation12], 128, 128, 8
    $region25: #{tpu_custom_call.1} parent=1 // pred_fallthru
      _
    // Predicated region
    $region26: #{tpu_custom_call.1} parent=1 // pred_check
      _
    $region27: #{tpu_custom_call.1} parent=1 // pred_check_branch
      %84 = sbr.rel (0) target = $region29
    $region28: #{tpu_custom_call.1} parent=1 // pred_region
      %s86 = ssub.s32 16, 16
      %87 = vsyncadd [#allocation12], %s86
      %s89 = sshll.u32 [#allocation13], 4
      %s90 = int_to_ptr.vmem [resolvable:$true] %s89
      %92 = dma.hbm_to_vmem [thread:$0]  %s6, 16, %s90, [#allocation12]
    $region29: #{tpu_custom_call.1} parent=1 // pred_fallthru
      _
    // Predicated region
    $region30: #{tpu_custom_call.1} parent=1 // pred_check
      _
    $region31: #{tpu_custom_call.1} parent=1 // pred_check_branch
      %94 = sbr.rel (0) target = $region33
    $region32: #{tpu_custom_call.1} parent=1 // pred_region
      %95 = dma.done [#allocation3], 896
    $region33: #{tpu_custom_call.1} parent=1 // pred_fallthru
      _
    // Predicated region
    $region34: #{tpu_custom_call.1} parent=1 // pred_check
      _
    $region35: #{tpu_custom_call.1} parent=1 // pred_check_branch
      %97 = sbr.rel (0) target = $region37
    $region36: #{tpu_custom_call.1} parent=1 // pred_region
      %98 = dma.done [#allocation6], 128
    $region37: #{tpu_custom_call.1} parent=1 // pred_fallthru
      _
    // Predicated region
    $region38: #{tpu_custom_call.1} parent=1 // pred_check
      _
    $region39: #{tpu_custom_call.1} parent=1 // pred_check_branch
      %100 = sbr.rel (0) target = $region41
    $region40: #{tpu_custom_call.1} parent=1 // pred_region
      %101 = dma.done [#allocation6], 16
    $region41: #{tpu_custom_call.1} parent=1 // pred_fallthru
      _
    // Predicated region
    $region42: #{tpu_custom_call.1} parent=1 // pred_check
      _
    $region43: #{tpu_custom_call.1} parent=1 // pred_check_branch
      %103 = sbr.rel (0) target = $region45
    $region44: #{tpu_custom_call.1} parent=1 // pred_region
      %104 = dma.done [#allocation9], 2048
    $region45: #{tpu_custom_call.1} parent=1 // pred_fallthru
      _
    // Predicated region
    $region46: #{tpu_custom_call.1} parent=1 // pred_check
      _
    $region47: #{tpu_custom_call.1} parent=1 // pred_check_branch
      %106 = sbr.rel (0) target = $region49
    $region48: #{tpu_custom_call.1} parent=1 // pred_region
      %107 = dma.done [#allocation9], 16
    $region49: #{tpu_custom_call.1} parent=1 // pred_fallthru
      _
    // Predicated region
    $region50: #{tpu_custom_call.1} parent=1 // pred_check
      _
    $region51: #{tpu_custom_call.1} parent=1 // pred_check_branch
      %109 = sbr.rel (0) target = $region53
    $region52: #{tpu_custom_call.1} parent=1 // pred_region
      %110 = dma.done [#allocation12], 2048
    $region53: #{tpu_custom_call.1} parent=1 // pred_fallthru
      _
    // Predicated region
    $region54: #{tpu_custom_call.1} parent=1 // pred_check
      _
    $region55: #{tpu_custom_call.1} parent=1 // pred_check_branch
      %112 = sbr.rel (0) target = $region57
    $region56: #{tpu_custom_call.1} parent=1 // pred_region
      %113 = dma.done [#allocation12], 16
    $region57: #{tpu_custom_call.1} parent=1 // pred_fallthru
      _
    %v114 = vld [vmem:[#allocation7] sm:$0x1]
    %v115 = vld [vmem:[#allocation10] sm:$0x1]
    %v116 = vld [vmem:[#allocation13] sm:$0x1]
    %v117 = vld [vmem:[#allocation2] sm:$0xff]
    %v118 = vld [vmem:[#allocation2 + $0x8] sm:$0xff]
    %v119 = vld [vmem:[#allocation2 + $0x10] sm:$0xff]
    %v120 = vld [vmem:[#allocation2 + $0x18] sm:$0xff]
    %v121 = vld [vmem:[#allocation2 + $0x20] sm:$0xff]
    %v122 = vld [vmem:[#allocation2 + $0x28] sm:$0xff]
    %v123 = vld [vmem:[#allocation2 + $0x30] sm:$0xff]
    %v124 = vld [vmem:[#allocation5] sm:$0xff]
    %v126 = vlaneseq
    %v127 = vshrl.u32 %v126, 7
    %v128 = vsub.s32 0, %v127
    %v129 = vrot.slane %v114, %v128
    %vm131 = vcmask 64512
    %v133 = vsel %vm131, %v117, 0
    %v136 = vsel %vm131, %v118, 0
    %v139 = vsel %vm131, %v119, 0
    %v142 = vsel %vm131, %v120, 0
    %v145 = vsel %vm131, %v121, 0
    %v148 = vsel %vm131, %v122, 0
    %v151 = vsel %vm131, %v123, 0
    %153 = vmatprep.subr.mxu0 0.0
    %154 = vmatpush1.msra.mxu0 %v124
    %155 = vmatprep.subr.mxu0 0.0
    %156 = vmatpush1.msra.mxu0 0.0
    %157 = vmatprep.subr.mxu0 0.0
    %158 = vmatpush1.msra.mxu0 0.0
    %159 = vmatprep.subr.mxu0 0.0
    %160 = vmatpush1.msra.mxu0 0.0
    %161 = vmatprep.subr.mxu0 0.0
    %162 = vmatpush1.msra.mxu0 0.0
    %163 = vmatprep.subr.mxu0 0.0
    %164 = vmatpush1.msra.mxu0 0.0
    %165 = vmatprep.subr.mxu0 0.0
    %166 = vmatpush1.msra.mxu0 0.0
    %167 = vmatprep.subr.mxu0 0.0
    %168 = vmatpush1.msra.mxu0 0.0
    %169 = vmatprep.subr.mxu0 0.0
    %170 = vmatpush1.msra.mxu0 0.0
    %171 = vmatprep.subr.mxu0 0.0
    %172 = vmatpush1.msra.mxu0 0.0
    %173 = vmatprep.subr.mxu0 0.0
    %174 = vmatpush1.msra.mxu0 0.0
    %175 = vmatprep.subr.mxu0 0.0
    %176 = vmatpush1.msra.mxu0 0.0
    %177 = vmatprep.subr.mxu0 0.0
    %178 = vmatpush1.msra.mxu0 0.0
    %179 = vmatprep.subr.mxu0 0.0
    %180 = vmatpush1.msra.mxu0 0.0
    %181 = vmatprep.subr.mxu0 0.0
    %182 = vmatpush1.msra.mxu0 0.0
    %183 = vmatprep.subr.mxu0 0.0
    %184 = vmatpush1.msra.mxu0 0.0
    %185 = vmatprep.subr.mxu0 0.0
    %186 = vmatpush1.msra.mxu0 0.0
    %187 = vmatprep.subr.mxu0 0.0
    %188 = vmatpush1.msra.mxu0 0.0
    %189 = vmatprep.subr.mxu0 0.0
    %190 = vmatpush1.msra.mxu0 0.0
    %191 = vmatprep.subr.mxu0 0.0
    %192 = vmatpush1.msra.mxu0 0.0
    %193 = vmatprep.subr.mxu0 0.0
    %194 = vmatpush1.msra.mxu0 0.0
    %195 = vmatprep.subr.mxu0 0.0
    %196 = vmatpush1.msra.mxu0 0.0
    %197 = vmatprep.subr.mxu0 0.0
    %198 = vmatpush1.msra.mxu0 0.0
    %199 = vmatprep.subr.mxu0 0.0
    %200 = vmatpush1.msra.mxu0 0.0
    %201 = vmatprep.subr.mxu0 0.0
    %202 = vmatpush1.msra.mxu0 0.0
    %203 = vmatprep.subr.mxu0 0.0
    %204 = vmatpush1.msra.mxu0 0.0
    %205 = vmatprep.subr.mxu0 0.0
    %206 = vmatpush1.msra.mxu0 0.0
    %207 = vmatprep.subr.mxu0 0.0
    %208 = vmatpush1.msra.mxu0 0.0
    %209 = vmatprep.subr.mxu0 0.0
    %210 = vmatpush1.msra.mxu0 0.0
    %211 = vmatprep.subr.mxu0 0.0
    %212 = vmatpush1.msra.mxu0 0.0
    %213 = vmatprep.subr.mxu0 0.0
    %214 = vmatpush1.msra.mxu0 0.0
    %215 = vmatprep.subr.mxu0 0.0
    %216 = vmatpush1.msra.mxu0 0.0
    %217 = vmatprep.mubr.f32.mxu0 0.0
    %218 = vmatmul.mubr.f32.gmra.mrb[0].mxu0 %v133
    %v219 = vpop.f32.mrb[0].mxu0
    %v220 = vadd.f32 %v129, %v219
    %v221 = vpop.f32.mrb[0].mxu0
    %222 = vmatprep.mubr.f32.mxu0 0.0
    %223 = vmatmul.mubr.f32.gmra.mrb[0].mxu0 %v136
    %v224 = vpop.f32.mrb[0].mxu0
    %v225 = vadd.f32 %v129, %v224
    %v226 = vpop.f32.mrb[0].mxu0
    %227 = vmatprep.mubr.f32.mxu0 0.0
    %228 = vmatmul.mubr.f32.gmra.mrb[0].mxu0 %v139
    %v229 = vpop.f32.mrb[0].mxu0
    %v230 = vadd.f32 %v129, %v229
    %v231 = vpop.f32.mrb[0].mxu0
    %232 = vmatprep.mubr.f32.mxu0 0.0
    %233 = vmatmul.mubr.f32.gmra.mrb[0].mxu0 %v142
    %v234 = vpop.f32.mrb[0].mxu0
    %v235 = vadd.f32 %v129, %v234
    %v236 = vpop.f32.mrb[0].mxu0
    %237 = vmatprep.mubr.f32.mxu0 0.0
    %238 = vmatmul.mubr.f32.gmra.mrb[0].mxu0 %v145
    %v239 = vpop.f32.mrb[0].mxu0
    %v240 = vadd.f32 %v129, %v239
    %v241 = vpop.f32.mrb[0].mxu0
    %242 = vmatprep.mubr.f32.mxu0 0.0
    %243 = vmatmul.mubr.f32.gmra.mrb[0].mxu0 %v148
    %v244 = vpop.f32.mrb[0].mxu0
    %v245 = vadd.f32 %v129, %v244
    %v246 = vpop.f32.mrb[0].mxu0
    %247 = vmatprep.mubr.f32.mxu0 0.0
    %248 = vmatmul.mubr.f32.gmra.mrb[0].mxu0 %v151
    %v249 = vpop.f32.mrb[0].mxu0
    %v250 = vadd.f32 %v129, %v249
    %v251 = vpop.f32.mrb[0].mxu0
    %252 = vdwg.mxu0
    %v253 = vmax.f32 %v220, 0.0
    %v254 = vmax.f32 %v225, 0.0
    %v255 = vmax.f32 %v230, 0.0
    %v256 = vmax.f32 %v235, 0.0
    %v257 = vmax.f32 %v240, 0.0
    %v258 = vmax.f32 %v245, 0.0
    %v259 = vmax.f32 %v250, 0.0
    %v260 = vld [vmem:[#allocation8] sm:$0xff]
    %v261 = vld [vmem:[#allocation8 + $0x8] sm:$0xff]
    %v262 = vld [vmem:[#allocation8 + $0x10] sm:$0xff]
    %v263 = vld [vmem:[#allocation8 + $0x18] sm:$0xff]
    %v264 = vld [vmem:[#allocation8 + $0x20] sm:$0xff]
    %v265 = vld [vmem:[#allocation8 + $0x28] sm:$0xff]
    %v266 = vld [vmem:[#allocation8 + $0x30] sm:$0xff]
    %v267 = vld [vmem:[#allocation8 + $0x38] sm:$0xff]
    %v268 = vld [vmem:[#allocation8 + $0x40] sm:$0xff]
    %v269 = vld [vmem:[#allocation8 + $0x48] sm:$0xff]
    %v270 = vld [vmem:[#allocation8 + $0x50] sm:$0xff]
    %v271 = vld [vmem:[#allocation8 + $0x58] sm:$0xff]
    %v272 = vld [vmem:[#allocation8 + $0x60] sm:$0xff]
    %v273 = vld [vmem:[#allocation8 + $0x68] sm:$0xff]
    %v274 = vld [vmem:[#allocation8 + $0x70] sm:$0xff]
    %v275 = vld [vmem:[#allocation8 + $0x78] sm:$0xff]
    %v277 = vlaneseq
    %v278 = vshrl.u32 %v277, 7
    %v279 = vsub.s32 0, %v278
    %v280 = vrot.slane %v115, %v279
    %282 = vmatprep.subr.mxu0 0.0
    %283 = vmatpush1.msra.mxu0 %v260
    %284 = vmatprep.subr.mxu0 0.0
    %285 = vmatpush1.msra.mxu0 %v261
    %286 = vmatprep.subr.mxu0 0.0
    %287 = vmatpush1.msra.mxu0 %v262
    %288 = vmatprep.subr.mxu0 0.0
    %289 = vmatpush1.msra.mxu0 %v263
    %290 = vmatprep.subr.mxu0 0.0
    %291 = vmatpush1.msra.mxu0 %v264
    %292 = vmatprep.subr.mxu0 0.0
    %293 = vmatpush1.msra.mxu0 %v265
    %294 = vmatprep.subr.mxu0 0.0
    %295 = vmatpush1.msra.mxu0 %v266
    %296 = vmatprep.subr.mxu0 0.0
    %297 = vmatpush1.msra.mxu0 %v267
    %298 = vmatprep.subr.mxu0 0.0
    %299 = vmatpush1.msra.mxu0 %v268
    %300 = vmatprep.subr.mxu0 0.0
    %301 = vmatpush1.msra.mxu0 %v269
    %302 = vmatprep.subr.mxu0 0.0
    %303 = vmatpush1.msra.mxu0 %v270
    %304 = vmatprep.subr.mxu0 0.0
    %305 = vmatpush1.msra.mxu0 %v271
    %306 = vmatprep.subr.mxu0 0.0
    %307 = vmatpush1.msra.mxu0 %v272
    %308 = vmatprep.subr.mxu0 0.0
    %309 = vmatpush1.msra.mxu0 %v273
    %310 = vmatprep.subr.mxu0 0.0
    %311 = vmatpush1.msra.mxu0 %v274
    %312 = vmatprep.subr.mxu0 0.0
    %313 = vmatpush1.msra.mxu0 %v275
    %314 = vmatprep.subr.mxu0 0.0
    %315 = vmatpush1.msra.mxu0 0.0
    %316 = vmatprep.subr.mxu0 0.0
    %317 = vmatpush1.msra.mxu0 0.0
    %318 = vmatprep.subr.mxu0 0.0
    %319 = vmatpush1.msra.mxu0 0.0
    %320 = vmatprep.subr.mxu0 0.0
    %321 = vmatpush1.msra.mxu0 0.0
    %322 = vmatprep.subr.mxu0 0.0
    %323 = vmatpush1.msra.mxu0 0.0
    %324 = vmatprep.subr.mxu0 0.0
    %325 = vmatpush1.msra.mxu0 0.0
    %326 = vmatprep.subr.mxu0 0.0
    %327 = vmatpush1.msra.mxu0 0.0
    %328 = vmatprep.subr.mxu0 0.0
    %329 = vmatpush1.msra.mxu0 0.0
    %330 = vmatprep.subr.mxu0 0.0
    %331 = vmatpush1.msra.mxu0 0.0
    %332 = vmatprep.subr.mxu0 0.0
    %333 = vmatpush1.msra.mxu0 0.0
    %334 = vmatprep.subr.mxu0 0.0
    %335 = vmatpush1.msra.mxu0 0.0
    %336 = vmatprep.subr.mxu0 0.0
    %337 = vmatpush1.msra.mxu0 0.0
    %338 = vmatprep.subr.mxu0 0.0
    %339 = vmatpush1.msra.mxu0 0.0
    %340 = vmatprep.subr.mxu0 0.0
    %341 = vmatpush1.msra.mxu0 0.0
    %342 = vmatprep.subr.mxu0 0.0
    %343 = vmatpush1.msra.mxu0 0.0
    %344 = vmatprep.subr.mxu0 0.0
    %345 = vmatpush1.msra.mxu0 0.0
    %346 = vmatprep.mubr.f32.mxu0 0.0
    %347 = vmatmul.mubr.f32.gmra.mrb[0].mxu0 %v253
    %v348 = vpop.f32.mrb[0].mxu0
    %v349 = vadd.f32 %v280, %v348
    %v350 = vpop.f32.mrb[0].mxu0
    %351 = vmatprep.mubr.f32.mxu0 0.0
    %352 = vmatmul.mubr.f32.gmra.mrb[0].mxu0 %v254
    %v353 = vpop.f32.mrb[0].mxu0
    %v354 = vadd.f32 %v280, %v353
    %v355 = vpop.f32.mrb[0].mxu0
    %356 = vmatprep.mubr.f32.mxu0 0.0
    %357 = vmatmul.mubr.f32.gmra.mrb[0].mxu0 %v255
    %v358 = vpop.f32.mrb[0].mxu0
    %v359 = vadd.f32 %v280, %v358
    %v360 = vpop.f32.mrb[0].mxu0
    %361 = vmatprep.mubr.f32.mxu0 0.0
    %362 = vmatmul.mubr.f32.gmra.mrb[0].mxu0 %v256
    %v363 = vpop.f32.mrb[0].mxu0
    %v364 = vadd.f32 %v280, %v363
    %v365 = vpop.f32.mrb[0].mxu0
    %366 = vmatprep.mubr.f32.mxu0 0.0
    %367 = vmatmul.mubr.f32.gmra.mrb[0].mxu0 %v257
    %v368 = vpop.f32.mrb[0].mxu0
    %v369 = vadd.f32 %v280, %v368
    %v370 = vpop.f32.mrb[0].mxu0
    %371 = vmatprep.mubr.f32.mxu0 0.0
    %372 = vmatmul.mubr.f32.gmra.mrb[0].mxu0 %v258
    %v373 = vpop.f32.mrb[0].mxu0
    %v374 = vadd.f32 %v280, %v373
    %v375 = vpop.f32.mrb[0].mxu0
    %376 = vmatprep.mubr.f32.mxu0 0.0
    %377 = vmatmul.mubr.f32.gmra.mrb[0].mxu0 %v259
    %v378 = vpop.f32.mrb[0].mxu0
    %v379 = vadd.f32 %v280, %v378
    %v380 = vpop.f32.mrb[0].mxu0
    %381 = vdwg.mxu0
    %v382 = vmax.f32 %v349, 0.0
    %v383 = vmax.f32 %v354, 0.0
    %v384 = vmax.f32 %v359, 0.0
    %v385 = vmax.f32 %v364, 0.0
    %v386 = vmax.f32 %v369, 0.0
    %v387 = vmax.f32 %v374, 0.0
    %v388 = vmax.f32 %v379, 0.0
    %v389 = vld [vmem:[#allocation11] sm:$0xff]
    %v390 = vld [vmem:[#allocation11 + $0x8] sm:$0xff]
    %v391 = vld [vmem:[#allocation11 + $0x10] sm:$0xff]
    %v392 = vld [vmem:[#allocation11 + $0x18] sm:$0xff]
    %v393 = vld [vmem:[#allocation11 + $0x20] sm:$0xff]
    %v394 = vld [vmem:[#allocation11 + $0x28] sm:$0xff]
    %v395 = vld [vmem:[#allocation11 + $0x30] sm:$0xff]
    %v396 = vld [vmem:[#allocation11 + $0x38] sm:$0xff]
    %v397 = vld [vmem:[#allocation11 + $0x40] sm:$0xff]
    %v398 = vld [vmem:[#allocation11 + $0x48] sm:$0xff]
    %v399 = vld [vmem:[#allocation11 + $0x50] sm:$0xff]
    %v400 = vld [vmem:[#allocation11 + $0x58] sm:$0xff]
    %v401 = vld [vmem:[#allocation11 + $0x60] sm:$0xff]
    %v402 = vld [vmem:[#allocation11 + $0x68] sm:$0xff]
    %v403 = vld [vmem:[#allocation11 + $0x70] sm:$0xff]
    %v404 = vld [vmem:[#allocation11 + $0x78] sm:$0xff]
    %v406 = vlaneseq
    %v407 = vshrl.u32 %v406, 7
    %v408 = vsub.s32 0, %v407
    %v409 = vrot.slane %v116, %v408
    %411 = vmatprep.subr.mxu0 0.0
    %412 = vmatpush1.msra.mxu0 %v389
    %413 = vmatprep.subr.mxu0 0.0
    %414 = vmatpush1.msra.mxu0 %v390
    %415 = vmatprep.subr.mxu0 0.0
    %416 = vmatpush1.msra.mxu0 %v391
    %417 = vmatprep.subr.mxu0 0.0
    %418 = vmatpush1.msra.mxu0 %v392
    %419 = vmatprep.subr.mxu0 0.0
    %420 = vmatpush1.msra.mxu0 %v393
    %421 = vmatprep.subr.mxu0 0.0
    %422 = vmatpush1.msra.mxu0 %v394
    %423 = vmatprep.subr.mxu0 0.0
    %424 = vmatpush1.msra.mxu0 %v395
    %425 = vmatprep.subr.mxu0 0.0
    %426 = vmatpush1.msra.mxu0 %v396
    %427 = vmatprep.subr.mxu0 0.0
    %428 = vmatpush1.msra.mxu0 %v397
    %429 = vmatprep.subr.mxu0 0.0
    %430 = vmatpush1.msra.mxu0 %v398
    %431 = vmatprep.subr.mxu0 0.0
    %432 = vmatpush1.msra.mxu0 %v399
    %433 = vmatprep.subr.mxu0 0.0
    %434 = vmatpush1.msra.mxu0 %v400
    %435 = vmatprep.subr.mxu0 0.0
    %436 = vmatpush1.msra.mxu0 %v401
    %437 = vmatprep.subr.mxu0 0.0
    %438 = vmatpush1.msra.mxu0 %v402
    %439 = vmatprep.subr.mxu0 0.0
    %440 = vmatpush1.msra.mxu0 %v403
    %441 = vmatprep.subr.mxu0 0.0
    %442 = vmatpush1.msra.mxu0 %v404
    %443 = vmatprep.subr.mxu0 0.0
    %444 = vmatpush1.msra.mxu0 0.0
    %445 = vmatprep.subr.mxu0 0.0
    %446 = vmatpush1.msra.mxu0 0.0
    %447 = vmatprep.subr.mxu0 0.0
    %448 = vmatpush1.msra.mxu0 0.0
    %449 = vmatprep.subr.mxu0 0.0
    %450 = vmatpush1.msra.mxu0 0.0
    %451 = vmatprep.subr.mxu0 0.0
    %452 = vmatpush1.msra.mxu0 0.0
    %453 = vmatprep.subr.mxu0 0.0
    %454 = vmatpush1.msra.mxu0 0.0
    %455 = vmatprep.subr.mxu0 0.0
    %456 = vmatpush1.msra.mxu0 0.0
    %457 = vmatprep.subr.mxu0 0.0
    %458 = vmatpush1.msra.mxu0 0.0
    %459 = vmatprep.subr.mxu0 0.0
    %460 = vmatpush1.msra.mxu0 0.0
    %461 = vmatprep.subr.mxu0 0.0
    %462 = vmatpush1.msra.mxu0 0.0
    %463 = vmatprep.subr.mxu0 0.0
    %464 = vmatpush1.msra.mxu0 0.0
    %465 = vmatprep.subr.mxu0 0.0
    %466 = vmatpush1.msra.mxu0 0.0
    %467 = vmatprep.subr.mxu0 0.0
    %468 = vmatpush1.msra.mxu0 0.0
    %469 = vmatprep.subr.mxu0 0.0
    %470 = vmatpush1.msra.mxu0 0.0
    %471 = vmatprep.subr.mxu0 0.0
    %472 = vmatpush1.msra.mxu0 0.0
    %473 = vmatprep.subr.mxu0 0.0
    %474 = vmatpush1.msra.mxu0 0.0
    %475 = vmatprep.mubr.f32.mxu0 0.0
    %476 = vmatmul.mubr.f32.gmra.mrb[0].mxu0 %v382
    %v477 = vpop.f32.mrb[0].mxu0
    %v478 = vadd.f32 %v409, %v477
    %v479 = vpop.f32.mrb[0].mxu0
    %480 = vmatprep.mubr.f32.mxu0 0.0
    %481 = vmatmul.mubr.f32.gmra.mrb[0].mxu0 %v383
    %v482 = vpop.f32.mrb[0].mxu0
    %v483 = vadd.f32 %v409, %v482
    %v484 = vpop.f32.mrb[0].mxu0
    %485 = vmatprep.mubr.f32.mxu0 0.0
    %486 = vmatmul.mubr.f32.gmra.mrb[0].mxu0 %v384
    %v487 = vpop.f32.mrb[0].mxu0
    %v488 = vadd.f32 %v409, %v487
    %v489 = vpop.f32.mrb[0].mxu0
    %490 = vmatprep.mubr.f32.mxu0 0.0
    %491 = vmatmul.mubr.f32.gmra.mrb[0].mxu0 %v385
    %v492 = vpop.f32.mrb[0].mxu0
    %v493 = vadd.f32 %v409, %v492
    %v494 = vpop.f32.mrb[0].mxu0
    %495 = vmatprep.mubr.f32.mxu0 0.0
    %496 = vmatmul.mubr.f32.gmra.mrb[0].mxu0 %v386
    %v497 = vpop.f32.mrb[0].mxu0
    %v498 = vadd.f32 %v409, %v497
    %v499 = vpop.f32.mrb[0].mxu0
    %500 = vmatprep.mubr.f32.mxu0 0.0
    %501 = vmatmul.mubr.f32.gmra.mrb[0].mxu0 %v387
    %v502 = vpop.f32.mrb[0].mxu0
    %v503 = vadd.f32 %v409, %v502
    %v504 = vpop.f32.mrb[0].mxu0
    %505 = vmatprep.mubr.f32.mxu0 0.0
    %506 = vmatmul.mubr.f32.gmra.mrb[0].mxu0 %v388
    %v507 = vpop.f32.mrb[0].mxu0
    %v508 = vadd.f32 %v409, %v507
    %v509 = vpop.f32.mrb[0].mxu0
    %510 = vdwg.mxu0
    %511 = vst [vmem:[#allocation14] sm:$0xff] %v478
    %512 = vst [vmem:[#allocation14 + $0x8] sm:$0xff] %v483
    %513 = vst [vmem:[#allocation14 + $0x10] sm:$0xff] %v488
    %514 = vst [vmem:[#allocation14 + $0x18] sm:$0xff] %v493
    %515 = vst [vmem:[#allocation14 + $0x20] sm:$0xff] %v498
    %516 = vst [vmem:[#allocation14 + $0x28] sm:$0xff] %v503
    %517 = vst [vmem:[#allocation14 + $0x30] sm:$0xff] %v508
    // Predicated region
    $region58: #{tpu_custom_call.1} parent=1 // pred_check
      _
    $region59: #{tpu_custom_call.1} parent=1 // pred_check_branch
      %519 = sbr.rel (0) target = $region61
    $region60: #{tpu_custom_call.1} parent=1 // pred_region
      %s521 = ssub.s32 896, 896
      %522 = vsyncadd [#allocation4], %s521
      %s523 = sshll.u32 [#allocation14], 4
      %s524 = int_to_ptr.vmem [resolvable:$true] %s523
      %529 = dma.vmem_to_hbm [thread:$0]  %s524, 896, %s7, [#allocation4], 128, 128, 8
    $region61: #{tpu_custom_call.1} parent=1 // pred_fallthru
      _
    // Predicated region
    $region62: #{tpu_custom_call.1} parent=1 // pred_check
      _
    $region63: #{tpu_custom_call.1} parent=1 // pred_check_branch
      %531 = sbr.rel (0) target = $region65
    $region64: #{tpu_custom_call.1} parent=1 // pred_region
      %532 = dma.done [#allocation4], 896
    $region65: #{tpu_custom_call.1} parent=1 // pred_fallthru
      _
    %533 = vsyncpa [#allocation3], 1
    %534 = vsyncpa [#allocation6], 1
    %535 = vsyncpa [#allocation9], 1
    %536 = vsyncpa [#allocation12], 1
    %537 = vsyncpa [#allocation4], 1

</llo_original>
